<compile_context>
chip_gen: v7x
topology: tpu7x:2x2x1
jax: 0.10.0
libtpu: 0.0.40
codegen_flags: <defaults>
</compile_context>

<pallas_src>
import jax
import jax.numpy as jnp
from jax.experimental import pallas as pl
from jax.experimental.pallas import tpu as pltpu

_BETA = 1.0 / 9.0
_LANES = 128
_CHUNK_ROWS = 128                 # rows per in-kernel fori_loop step (16 vregs / input)
_PALLAS_MIN_ELEMENTS = 64 * 1024  # below this, plain jnp wins over pallas_call fixed cost


def _device_kind():
    try:
        return jax.devices()[0].device_kind.lower()
    except Exception:
        return ""


_KIND = _device_kind()
_IS_V7X = ("v7" in _KIND) or ("7x" in _KIND)
_NUM_SPLITS = 2 if _IS_V7X else 1        # 2 TensorCores per chip only on v7x
_MAX_TILE_ROWS = 4096 if _IS_V7X else 2048  # 2 MiB vs 1 MiB f32 per input per step


def _smooth_l1(d):
    # Branch-free smooth L1 with beta = 1/9 on the (already-abs) difference.
    # Identical to the where() form:  d<beta: 0.5/beta*d^2 ; else: d - 0.5*beta
    dc = jnp.minimum(d, _BETA)
    return (0.5 / _BETA) * dc * dc + jnp.maximum(d - _BETA, 0.0)


def _partial_sums(p, g, w):
    p = p.astype(jnp.float32)
    g = g.astype(jnp.float32)
    w = w.astype(jnp.float32)
    loss = jnp.sum(_smooth_l1(jnp.abs(p - g)) * w)
    cnt = jnp.sum((w > 0).astype(jnp.float32))
    return loss, cnt


def _make_kernel(r_rows, tile_rows, tiles_per_split, may_be_ragged):
    n_chunks = tile_rows // _CHUNK_ROWS

    def kernel(p_ref, g_ref, w_ref, loss_ref, cnt_ref):
        i = pl.program_id(1)

        @pl.when(i == 0)
        def _init():
            loss_ref[...] = jnp.zeros_like(loss_ref)
            cnt_ref[...] = jnp.zeros_like(cnt_ref)

        tile_idx = pl.program_id(0) * tiles_per_split + i
        tile_start = tile_idx * tile_rows

        def accumulate(masked):
            def body(c, carry):
                loss_acc, cnt_acc = carry
                r0 = pl.multiple_of(c * _CHUNK_ROWS, _CHUNK_ROWS)
                p = p_ref[pl.ds(r0, _CHUNK_ROWS), :].astype(jnp.float32)
                g = g_ref[pl.ds(r0, _CHUNK_ROWS), :].astype(jnp.float32)
                w = w_ref[pl.ds(r0, _CHUNK_ROWS), :].astype(jnp.float32)
                loss_e = _smooth_l1(jnp.abs(p - g)) * w
                pos_e = jnp.where(w > 0, 1.0, 0.0)
                if masked:
                    # Rows past the real data (ragged last tile / phantom tile).
                    # Must be a select (not multiply-by-mask): the un-DMA'd part of
                    # the VMEM buffer holds stale data that may be NaN/Inf.
                    row = jax.lax.broadcasted_iota(jnp.int32, (_CHUNK_ROWS, _LANES), 0)
                    valid = (tile_start + r0 + row) < r_rows
                    loss_e = jnp.where(valid, loss_e, 0.0)
                    pos_e = jnp.where(valid, pos_e, 0.0)
                # Fold (CHUNK,128) -> (8,128) with pure VPU adds; cross-lane
                # reduction stays out of the kernel (done once in the wrapper).
                loss_acc = loss_acc + loss_e.reshape(-1, 8, _LANES).sum(axis=0)
                cnt_acc = cnt_acc + pos_e.reshape(-1, 8, _LANES).sum(axis=0)
                return loss_acc, cnt_acc

            zeros = jnp.zeros((8, _LANES), jnp.float32)
            loss_acc, cnt_acc = jax.lax.fori_loop(0, n_chunks, body, (zeros, zeros))
            loss_ref[...] += loss_acc
            cnt_ref[...] += cnt_acc

        if may_be_ragged:
            is_full = (tile_start + tile_rows) <= r_rows

            @pl.when(is_full)
            def _fast_path():          # steady state: no mask work at all
                accumulate(False)

            @pl.when(jnp.logical_not(is_full))
            def _masked_path():        # ragged last tile / phantom tile only
                accumulate(True)
        else:
            accumulate(False)

    return kernel


def offsets_loss(pred, gt, weights):
    """Pallas TPU implementation of OffsetsLoss.forward(pred, gt, weights)."""
    assert pred.shape == gt.shape == weights.shape
    n = pred.size

    if n == 0:
        return jnp.float32(0.0)

    # Tiny-input fast path: pallas_call fixed cost dwarfs the work here.
    if n < _PALLAS_MIN_ELEMENTS:
        loss_sum, pos_cnt = _partial_sums(pred, gt, weights)
        denom = jnp.where(pos_cnt == 0.0, jnp.float32(1.0), pos_cnt)
        return loss_sum / denom

    fp = pred.reshape(-1)
    fg = gt.reshape(-1)
    fw = weights.reshape(-1)

    r_rows = n // _LANES          # real rows of 128 lanes
    n_main = r_rows * _LANES      # lane-aligned prefix handled by Pallas

    # Reshape is free when n is lane-aligned (no prefix-slice HBM copy); the
    # in-kernel row mask handles the ragged last tile. Only the < 128-element
    # remainder goes to the jnp tail below.
    p2 = fp[:n_main].reshape(r_rows, _LANES)
    g2 = fg[:n_main].reshape(r_rows, _LANES)
    w2 = fw[:n_main].reshape(r_rows, _LANES)

    tile_rows = min(_MAX_TILE_ROWS, (r_rows // _CHUNK_ROWS) * _CHUNK_ROWS)
    n_tiles = pl.cdiv(r_rows, tile_rows)
    num_splits = min(_NUM_SPLITS, n_tiles)
    tiles_per_split = pl.cdiv(n_tiles, num_splits)
    has_phantom = num_splits * tiles_per_split != n_tiles
    last_ragged = (r_rows % tile_rows) != 0
    may_be_ragged = has_phantom or last_ragged

    def in_map(c, i):
        t = c * tiles_per_split + i
        # Phantom tiles (only possible on the 2-split v7x path) re-read the last
        # real tile; their contribution is masked to zero inside the kernel.
        return (jnp.minimum(t, n_tiles - 1), 0)

    in_spec = pl.BlockSpec((tile_rows, _LANES), in_map)
    out_spec = pl.BlockSpec((8, _LANES), lambda c, i: (c, 0))

    loss_parts, cnt_parts = pl.pallas_call(
        _make_kernel(r_rows, tile_rows, tiles_per_split, may_be_ragged),
        out_shape=(
            jax.ShapeDtypeStruct((num_splits * 8, _LANES), jnp.float32),
            jax.ShapeDtypeStruct((num_splits * 8, _LANES), jnp.float32),
        ),
        grid_spec=pltpu.PrefetchScalarGridSpec(
            num_scalar_prefetch=0,
            grid=(num_splits, tiles_per_split),
            in_specs=[in_spec, in_spec, in_spec],
            out_specs=[out_spec, out_spec],
        ),
        compiler_params=pltpu.CompilerParams(
            dimension_semantics=("parallel", "arbitrary"),
            vmem_limit_bytes=32 * 1024 * 1024,
        ),
    )(p2, g2, w2)

    loss_sum = jnp.sum(loss_parts)
    pos_cnt = jnp.sum(cnt_parts)

    if n_main < n:
        # ragged tail (< 128 elements): plain jnp, negligible cost
        tl, tc = _partial_sums(fp[n_main:], fg[n_main:], fw[n_main:])
        loss_sum = loss_sum + tl
        pos_cnt = pos_cnt + tc

    denom = jnp.where(pos_cnt == 0.0, jnp.float32(1.0), pos_cnt)
    return loss_sum / denom


def _reference(pred, gt, weights, beta=_BETA):
    # Literal translation of the PyTorch module.
    pred = pred.astype(jnp.float32)
    gt = gt.astype(jnp.float32)
    weights = weights.astype(jnp.float32)
    d = jnp.abs(pred - gt)
    l = jnp.where(d < beta, 0.5 * d * d / beta, d - 0.5 * beta)
    num_pos = jnp.sum(weights > 0).astype(jnp.float32)
    num_pos = jnp.where(num_pos == 0, 1.0, num_pos)
    return jnp.sum(l * weights) / num_pos


if __name__ == "__main__":
    key = jax.random.PRNGKey(0)

    def make_inputs(k, shape, dtype=jnp.float32):
        k1, k2, k3 = jax.random.split(k, 3)
        pred = jax.random.normal(k1, shape, dtype=jnp.float32).astype(dtype)
        gt = jax.random.normal(k2, shape, dtype=jnp.float32).astype(dtype)
        w = jnp.where(jax.random.uniform(k3, shape) > 0.7, 1.0, 0.0).astype(dtype)
        return pred, gt, w

    cases = [
        ((2, 4, 16, 16), jnp.float32),    # primary offsets-head case -> jnp fast path
        ((4, 4, 160, 176), jnp.float32),  # Pallas: multi-tile + ragged last tile
        ((2, 4, 97, 131), jnp.bfloat16),  # Pallas: bf16 streaming + jnp tail (n % 128 != 0)
    ]
    keys = jax.random.split(key, len(cases))
    for k, (shape, dtype) in zip(keys, cases):
        pred, gt, w = make_inputs(k, shape, dtype)
        loss = offsets_loss(pred, gt, w)
        jax.block_until_ready(loss)
        ref = _reference(pred, gt, w)
        assert jnp.allclose(loss, ref, rtol=3e-5, atol=1e-5), (shape, loss, ref)

    print("KERNEL_OK")
</pallas_src>

<mosaic_0001>
module attributes {stable_mosaic.version = 11 : i64} {
  func.func @kernel(%arg0: i32, %arg1: i32, %arg2: memref<2048x128xf32, #tpu.memory_space<vmem>>, %arg3: memref<2048x128xf32, #tpu.memory_space<vmem>>, %arg4: memref<2048x128xf32, #tpu.memory_space<vmem>>, %arg5: memref<8x128xf32, #tpu.memory_space<vmem>>, %arg6: memref<8x128xf32, #tpu.memory_space<vmem>>) attributes {dimension_semantics = [#tpu.dimension_semantics<parallel>, #tpu.dimension_semantics<arbitrary>], iteration_bounds = array<i64: 1, 2>, scalar_prefetch = 0 : i64, scratch_operands = 0 : i64, tpu.core_type = #tpu.core_type<tc>, window_params = [{transform_indices = @transform_0, window_bounds = array<i64: 2048, 128>}, {transform_indices = @transform_1, window_bounds = array<i64: 2048, 128>}, {transform_indices = @transform_2, window_bounds = array<i64: 2048, 128>}, {transform_indices = @transform_3, window_bounds = array<i64: 8, 128>}, {transform_indices = @transform_4, window_bounds = array<i64: 8, 128>}]} {
    %c0_i32 = arith.constant 0 : i32
    %0 = arith.cmpi eq, %arg1, %c0_i32 : i32
    %1 = arith.extui %0 : i1 to i32
    %c0_i32_0 = arith.constant 0 : i32
    %2 = arith.cmpi ne, %1, %c0_i32_0 : i32
    scf.if %2 {
      %cst = arith.constant 0.000000e+00 : f32
      %13 = vector.broadcast %cst : f32 to vector<8x128xf32>
      %c0 = arith.constant 0 : index
      %c0_4 = arith.constant 0 : index
      %14 = vector.load %arg5[%c0, %c0_4] : memref<8x128xf32, #tpu.memory_space<vmem>>, vector<8x128xf32>
      tpu.vector_store %arg5[%c0, %c0_4], %13 {strides = array<i32>} : memref<8x128xf32, #tpu.memory_space<vmem>>, vector<8x128xf32>,
      %cst_5 = arith.constant 0.000000e+00 : f32
      %15 = vector.broadcast %cst_5 : f32 to vector<8x128xf32>
      %c0_6 = arith.constant 0 : index
      %c0_7 = arith.constant 0 : index
      %16 = vector.load %arg6[%c0_6, %c0_7] : memref<8x128xf32, #tpu.memory_space<vmem>>, vector<8x128xf32>
      tpu.vector_store %arg6[%c0_6, %c0_7], %15 {strides = array<i32>} : memref<8x128xf32, #tpu.memory_space<vmem>>, vector<8x128xf32>,
    } else {
    }
    %c2_i32 = arith.constant 2 : i32
    %3 = arith.muli %arg0, %c2_i32 : i32
    %4 = arith.addi %3, %arg1 : i32
    %c2048_i32 = arith.constant 2048 : i32
    %5 = arith.muli %4, %c2048_i32 : i32
    %c2048_i32_1 = arith.constant 2048 : i32
    %6 = arith.addi %5, %c2048_i32_1 : i32
    %c3520_i32 = arith.constant 3520 : i32
    %7 = arith.cmpi sle, %6, %c3520_i32 : i32
    %8 = arith.extui %7 : i1 to i32
    %c0_i32_2 = arith.constant 0 : i32
    %9 = arith.cmpi ne, %8, %c0_i32_2 : i32
    scf.if %9 {
      %cst = arith.constant 0.000000e+00 : f32
      %13 = vector.broadcast %cst : f32 to vector<8x128xf32>
      %c0_i32_4 = arith.constant 0 : i32
      %c16_i32 = arith.constant 16 : i32
      %14 = arith.addi %c0_i32_4, %c16_i32 : i32
      %c1_i32 = arith.constant 1 : i32
      %15:2 = scf.for %arg7 = %c0_i32_4 to %14 step %c1_i32 iter_args(%arg8 = %13, %arg9 = %13) -> (vector<8x128xf32>, vector<8x128xf32>)  : i32 {
        %c128_i32 = arith.constant 128 : i32
        %22 = arith.muli %arg7, %c128_i32 : i32
        %23 = tpu.assume_multiple %22, 128 : i32
        %24 = arith.index_cast %23 : i32 to index
        %c0_13 = arith.constant 0 : index
        %25 = vector.load %arg2[%24, %c0_13] : memref<2048x128xf32, #tpu.memory_space<vmem>>, vector<128x128xf32>
        %26 = arith.index_cast %23 : i32 to index
        %c0_14 = arith.constant 0 : index
        %27 = vector.load %arg3[%26, %c0_14] : memref<2048x128xf32, #tpu.memory_space<vmem>>, vector<128x128xf32>
        %28 = arith.index_cast %23 : i32 to index
        %c0_15 = arith.constant 0 : index
        %29 = vector.load %arg4[%28, %c0_15] : memref<2048x128xf32, #tpu.memory_space<vmem>>, vector<128x128xf32>
        %30 = arith.subf %25, %27 : vector<128x128xf32>
        %31 = math.absf %30 : vector<128x128xf32>
        %cst_16 = arith.constant 0.111111112 : f32
        %32 = vector.broadcast %cst_16 : f32 to vector<128x128xf32>
        %33 = arith.minimumf %31, %32 : vector<128x128xf32>
        %cst_17 = arith.constant 4.500000e+00 : f32
        %34 = vector.broadcast %cst_17 : f32 to vector<128x128xf32>
        %35 = arith.mulf %34, %33 : vector<128x128xf32>
        %36 = arith.mulf %35, %33 : vector<128x128xf32>
        %cst_18 = arith.constant 0.111111112 : f32
        %37 = vector.broadcast %cst_18 : f32 to vector<128x128xf32>
        %38 = arith.subf %31, %37 : vector<128x128xf32>
        %cst_19 = arith.constant 0.000000e+00 : f32
        %39 = vector.broadcast %cst_19 : f32 to vector<128x128xf32>
        %40 = arith.maximumf %38, %39 : vector<128x128xf32>
        %41 = arith.addf %36, %40 : vector<128x128xf32>
        %42 = arith.mulf %41, %29 : vector<128x128xf32>
        %cst_20 = arith.constant 0.000000e+00 : f32
        %43 = vector.broadcast %cst_20 : f32 to vector<128x128xf32>
        %44 = arith.cmpf ogt, %29, %43 : vector<128x128xf32>
        %cst_21 = arith.constant 1.000000e+00 : f32
        %cst_22 = arith.constant 0.000000e+00 : f32
        %45 = vector.broadcast %cst_21 : f32 to vector<128x128xf32>
        %46 = vector.broadcast %cst_22 : f32 to vector<128x128xf32>
        %47 = arith.select %44, %45, %46 : vector<128x128xi1>, vector<128x128xf32>
        %48 = vector.shape_cast %42 : vector<128x128xf32> to vector<16x8x128xf32>
        %cst_23 = arith.constant dense<0.000000e+00> : vector<8x128xf32>
        %49 = vector.multi_reduction <add>, %48, %cst_23 [0] : vector<16x8x128xf32> to vector<8x128xf32>
        %50 = arith.addf %arg8, %49 : vector<8x128xf32>
        %51 = vector.shape_cast %47 : vector<128x128xf32> to vector<16x8x128xf32>
        %cst_24 = arith.constant dense<0.000000e+00> : vector<8x128xf32>
        %52 = vector.multi_reduction <add>, %51, %cst_24 [0] : vector<16x8x128xf32> to vector<8x128xf32>
        %53 = arith.addf %arg9, %52 : vector<8x128xf32>
        scf.yield %50, %53 : vector<8x128xf32>, vector<8x128xf32>
      }
      %c16_i32_5 = arith.constant 16 : i32
      %c0 = arith.constant 0 : index
      %c0_6 = arith.constant 0 : index
      %16 = vector.load %arg5[%c0, %c0_6] : memref<8x128xf32, #tpu.memory_space<vmem>>, vector<8x128xf32>
      %17 = arith.addf %16, %15#0 : vector<8x128xf32>
      %c0_7 = arith.constant 0 : index
      %c0_8 = arith.constant 0 : index
      %18 = vector.load %arg5[%c0_7, %c0_8] : memref<8x128xf32, #tpu.memory_space<vmem>>, vector<8x128xf32>
      tpu.vector_store %arg5[%c0_7, %c0_8], %17 {strides = array<i32>} : memref<8x128xf32, #tpu.memory_space<vmem>>, vector<8x128xf32>,
      %c0_9 = arith.constant 0 : index
      %c0_10 = arith.constant 0 : index
      %19 = vector.load %arg6[%c0_9, %c0_10] : memref<8x128xf32, #tpu.memory_space<vmem>>, vector<8x128xf32>
      %20 = arith.addf %19, %15#1 : vector<8x128xf32>
      %c0_11 = arith.constant 0 : index
      %c0_12 = arith.constant 0 : index
      %21 = vector.load %arg6[%c0_11, %c0_12] : memref<8x128xf32, #tpu.memory_space<vmem>>, vector<8x128xf32>
      tpu.vector_store %arg6[%c0_11, %c0_12], %20 {strides = array<i32>} : memref<8x128xf32, #tpu.memory_space<vmem>>, vector<8x128xf32>,
    } else {
    }
    %true = arith.constant true
    %10 = arith.xori %7, %true : i1
    %11 = arith.extui %10 : i1 to i32
    %c0_i32_3 = arith.constant 0 : i32
    %12 = arith.cmpi ne, %11, %c0_i32_3 : i32
    scf.if %12 {
      %cst = arith.constant 0.000000e+00 : f32
      %13 = vector.broadcast %cst : f32 to vector<8x128xf32>
      %c0_i32_4 = arith.constant 0 : i32
      %c16_i32 = arith.constant 16 : i32
      %14 = arith.addi %c0_i32_4, %c16_i32 : i32
      %c1_i32 = arith.constant 1 : i32
      %15:2 = scf.for %arg7 = %c0_i32_4 to %14 step %c1_i32 iter_args(%arg8 = %13, %arg9 = %13) -> (vector<8x128xf32>, vector<8x128xf32>)  : i32 {
        %c128_i32 = arith.constant 128 : i32
        %22 = arith.muli %arg7, %c128_i32 : i32
        %23 = tpu.assume_multiple %22, 128 : i32
        %24 = arith.index_cast %23 : i32 to index
        %c0_13 = arith.constant 0 : index
        %25 = vector.load %arg2[%24, %c0_13] : memref<2048x128xf32, #tpu.memory_space<vmem>>, vector<128x128xf32>
        %26 = arith.index_cast %23 : i32 to index
        %c0_14 = arith.constant 0 : index
        %27 = vector.load %arg3[%26, %c0_14] : memref<2048x128xf32, #tpu.memory_space<vmem>>, vector<128x128xf32>
        %28 = arith.index_cast %23 : i32 to index
        %c0_15 = arith.constant 0 : index
        %29 = vector.load %arg4[%28, %c0_15] : memref<2048x128xf32, #tpu.memory_space<vmem>>, vector<128x128xf32>
        %30 = arith.subf %25, %27 : vector<128x128xf32>
        %31 = math.absf %30 : vector<128x128xf32>
        %cst_16 = arith.constant 0.111111112 : f32
        %32 = vector.broadcast %cst_16 : f32 to vector<128x128xf32>
        %33 = arith.minimumf %31, %32 : vector<128x128xf32>
        %cst_17 = arith.constant 4.500000e+00 : f32
        %34 = vector.broadcast %cst_17 : f32 to vector<128x128xf32>
        %35 = arith.mulf %34, %33 : vector<128x128xf32>
        %36 = arith.mulf %35, %33 : vector<128x128xf32>
        %cst_18 = arith.constant 0.111111112 : f32
        %37 = vector.broadcast %cst_18 : f32 to vector<128x128xf32>
        %38 = arith.subf %31, %37 : vector<128x128xf32>
        %cst_19 = arith.constant 0.000000e+00 : f32
        %39 = vector.broadcast %cst_19 : f32 to vector<128x128xf32>
        %40 = arith.maximumf %38, %39 : vector<128x128xf32>
        %41 = arith.addf %36, %40 : vector<128x128xf32>
        %42 = arith.mulf %41, %29 : vector<128x128xf32>
        %cst_20 = arith.constant 0.000000e+00 : f32
        %43 = vector.broadcast %cst_20 : f32 to vector<128x128xf32>
        %44 = arith.cmpf ogt, %29, %43 : vector<128x128xf32>
        %cst_21 = arith.constant 1.000000e+00 : f32
        %cst_22 = arith.constant 0.000000e+00 : f32
        %45 = vector.broadcast %cst_21 : f32 to vector<128x128xf32>
        %46 = vector.broadcast %cst_22 : f32 to vector<128x128xf32>
        %47 = arith.select %44, %45, %46 : vector<128x128xi1>, vector<128x128xf32>
        %48 = tpu.iota {dimensions = array<i32: 0>} : vector<128x128xi32>
        %49 = arith.addi %5, %23 : i32
        %50 = vector.broadcast %49 : i32 to vector<128x128xi32>
        %51 = arith.addi %50, %48 : vector<128x128xi32>
        %c3520_i32_23 = arith.constant 3520 : i32
        %52 = vector.broadcast %c3520_i32_23 : i32 to vector<128x128xi32>
        %53 = arith.cmpi slt, %51, %52 : vector<128x128xi32>
        %cst_24 = arith.constant 0.000000e+00 : f32
        %54 = vector.broadcast %cst_24 : f32 to vector<128x128xf32>
        %55 = arith.select %53, %42, %54 : vector<128x128xi1>, vector<128x128xf32>
        %cst_25 = arith.constant 0.000000e+00 : f32
        %56 = vector.broadcast %cst_25 : f32 to vector<128x128xf32>
        %57 = arith.select %53, %47, %56 : vector<128x128xi1>, vector<128x128xf32>
        %58 = vector.shape_cast %55 : vector<128x128xf32> to vector<16x8x128xf32>
        %cst_26 = arith.constant dense<0.000000e+00> : vector<8x128xf32>
        %59 = vector.multi_reduction <add>, %58, %cst_26 [0] : vector<16x8x128xf32> to vector<8x128xf32>
        %60 = arith.addf %arg8, %59 : vector<8x128xf32>
        %61 = vector.shape_cast %57 : vector<128x128xf32> to vector<16x8x128xf32>
        %cst_27 = arith.constant dense<0.000000e+00> : vector<8x128xf32>
        %62 = vector.multi_reduction <add>, %61, %cst_27 [0] : vector<16x8x128xf32> to vector<8x128xf32>
        %63 = arith.addf %arg9, %62 : vector<8x128xf32>
        scf.yield %60, %63 : vector<8x128xf32>, vector<8x128xf32>
      }
      %c16_i32_5 = arith.constant 16 : i32
      %c0 = arith.constant 0 : index
      %c0_6 = arith.constant 0 : index
      %16 = vector.load %arg5[%c0, %c0_6] : memref<8x128xf32, #tpu.memory_space<vmem>>, vector<8x128xf32>
      %17 = arith.addf %16, %15#0 : vector<8x128xf32>
      %c0_7 = arith.constant 0 : index
      %c0_8 = arith.constant 0 : index
      %18 = vector.load %arg5[%c0_7, %c0_8] : memref<8x128xf32, #tpu.memory_space<vmem>>, vector<8x128xf32>
      tpu.vector_store %arg5[%c0_7, %c0_8], %17 {strides = array<i32>} : memref<8x128xf32, #tpu.memory_space<vmem>>, vector<8x128xf32>,
      %c0_9 = arith.constant 0 : index
      %c0_10 = arith.constant 0 : index
      %19 = vector.load %arg6[%c0_9, %c0_10] : memref<8x128xf32, #tpu.memory_space<vmem>>, vector<8x128xf32>
      %20 = arith.addf %19, %15#1 : vector<8x128xf32>
      %c0_11 = arith.constant 0 : index
      %c0_12 = arith.constant 0 : index
      %21 = vector.load %arg6[%c0_11, %c0_12] : memref<8x128xf32, #tpu.memory_space<vmem>>, vector<8x128xf32>
      tpu.vector_store %arg6[%c0_11, %c0_12], %20 {strides = array<i32>} : memref<8x128xf32, #tpu.memory_space<vmem>>, vector<8x128xf32>,
    } else {
    }
    return
  }
  func.func @transform_0(%arg0: i32, %arg1: i32) -> (i32, i32) {
    %c2_i32 = arith.constant 2 : i32
    %0 = arith.muli %arg0, %c2_i32 : i32
    %1 = arith.addi %0, %arg1 : i32
    %c1_i32 = arith.constant 1 : i32
    %2 = arith.minsi %1, %c1_i32 : i32
    %c0_i32 = arith.constant 0 : i32
    %c0_i32_0 = arith.constant 0 : i32
    return %2, %c0_i32 : i32, i32
  }
  func.func @transform_1(%arg0: i32, %arg1: i32) -> (i32, i32) {
    %c2_i32 = arith.constant 2 : i32
    %0 = arith.muli %arg0, %c2_i32 : i32
    %1 = arith.addi %0, %arg1 : i32
    %c1_i32 = arith.constant 1 : i32
    %2 = arith.minsi %1, %c1_i32 : i32
    %c0_i32 = arith.constant 0 : i32
    %c0_i32_0 = arith.constant 0 : i32
    return %2, %c0_i32 : i32, i32
  }
  func.func @transform_2(%arg0: i32, %arg1: i32) -> (i32, i32) {
    %c2_i32 = arith.constant 2 : i32
    %0 = arith.muli %arg0, %c2_i32 : i32
    %1 = arith.addi %0, %arg1 : i32
    %c1_i32 = arith.constant 1 : i32
    %2 = arith.minsi %1, %c1_i32 : i32
    %c0_i32 = arith.constant 0 : i32
    %c0_i32_0 = arith.constant 0 : i32
    return %2, %c0_i32 : i32, i32
  }
  func.func @transform_3(%arg0: i32, %arg1: i32) -> (i32, i32) {
    %c0_i32 = arith.constant 0 : i32
    %c0_i32_0 = arith.constant 0 : i32
    return %arg0, %c0_i32 : i32, i32
  }
  func.func @transform_4(%arg0: i32, %arg1: i32) -> (i32, i32) {
    %c0_i32 = arith.constant 0 : i32
    %c0_i32_0 = arith.constant 0 : i32
    return %arg0, %c0_i32 : i32, i32
  }
}

</mosaic_0001>

<llo_original>
// kernel: tpu_custom_call.1
$region0: #{tpu_custom_call.1}
  #allocation0 [shape = 'u32[]', space=smem, size = 0x4, offset = 0x4, fixed_abs, tag = 'smem constant byte address 0x4 - core index']
  #allocation1 [shape = 'u32[144,128]{1,0:T(1,128)}', space=vmem, size = 0x12000, scoped, tag = 'internal scratch']
  %s0 = inlined_call_operand.hbm [shape: f32[3520,128], index: 0, kind: input, shape index: {}]
  %s1 = inlined_call_operand.hbm [shape: f32[3520,128], index: 1, kind: input, shape index: {}]
  %s2 = inlined_call_operand.hbm [shape: f32[3520,128], index: 2, kind: input, shape index: {}]
  %s3 = inlined_call_operand.hbm [shape: f32[8,128], index: 3, kind: output, shape index: {0}]
  %s4 = inlined_call_operand.hbm [shape: f32[8,128], index: 4, kind: output, shape index: {1}]
  %5 = xla_tuple %s3, %s4
  %s6 = sld [smem:[#allocation0]]
  $region91: #{tpu_custom_call.1} parent=0
    _
  %s8 = ssub.s32 1, %s6
  %s9 = scalar_select 0, %s8, %s6
  $region1: #{tpu_custom_call.1} parent=0
    #allocation2 [shape = 'u8[2097152]{0}', space=vmem, size = 0x200000, scoped, tag = 'input window, operand 0']
    #allocation3 [shape = 's32[2]{0}', space=sflag, size = 0x8, scoped, tag = 'scoped memory for tpu_custom_call.1']
    #allocation4 [shape = 's32[2]{0}', space=sflag, size = 0x8, scoped, tag = 'scoped memory for tpu_custom_call.1']
    #allocation5 [shape = 'u8[2097152]{0}', space=vmem, size = 0x200000, scoped, tag = 'input window, operand 1']
    #allocation6 [shape = 's32[2]{0}', space=sflag, size = 0x8, scoped, tag = 'scoped memory for tpu_custom_call.1']
    #allocation7 [shape = 'u8[2097152]{0}', space=vmem, size = 0x200000, scoped, tag = 'input window, operand 2']
    #allocation8 [shape = 'u8[4096]{0}', space=vmem, size = 0x1000, scoped, tag = 'output window, operand 0, single buffered']
    #allocation9 [shape = 'u8[4096]{0}', space=vmem, size = 0x1000, scoped, tag = 'output window, operand 1, single buffered']
    #allocation10 [shape = 's32[1]{0}', space=sflag, size = 0x4, scoped, tag = 'scoped memory for tpu_custom_call.1']
    %10 = vsyncpa [#allocation3], 0
    %s11 = scalar_lea.sflag [#allocation3], 1
    %12 = vsyncpa %s11, 0
    %13 = vsyncpa [#allocation6], 0
    %s14 = scalar_lea.sflag [#allocation6], 1
    %15 = vsyncpa %s14, 0
    %16 = vsyncpa [#allocation4], 0
    %17 = vsyncpa [#allocation10], 0
    loop: start=0, step=1, limit=4
    $region2: #{tpu_custom_call.1} parent=1 // loop_pre_header
      _
    $region3: #{tpu_custom_call.1} parent=1 // loop_header
      %s19 = sphi 0, %s23
      %p20 = scmp.ge.s32.totalorder %s19, 4
      %s26 = sphi 0, %s38
      %s27 = sphi 0, %s34
      %s28 = sphi 0, %s26
      %s29 = sphi 0, %s27
      %s30 = sphi 0, %s28
      %s31 = sphi 0, %s29
      %s49 = sphi 0, %s51
      %s52 = sphi 0, %s49
      %s53 = sphi 0, %s52
      %s69 = sphi 0, %s53
      %s83 = sphi 0, %s85
      %s86 = sphi 0, %s83
      %s87 = sphi 0, %s86
      %s103 = sphi 0, %s87
      %s117 = sphi 0, %s119
      %s120 = sphi 0, %s117
      %s121 = sphi 0, %s120
      %s137 = sphi 0, %s121
      %s143 = sphi 0, %s145
      %s146 = sphi 0, %s143
      %s147 = sphi 0, %s146
      %s163 = sphi 0, %s147
      %s169 = sphi 0, %s171
      %s172 = sphi 0, %s169
      %s173 = sphi 0, %s172
      %s189 = sphi 0, %s173
    $region4: #{tpu_custom_call.1} parent=1 // loop_header_branch
      %22 = sbr.rel (%p20) target = $region8
    $region5: #{tpu_custom_call.1} parent=1 // loop_body
      %s24 = ssub.s32 %s19, 1
      %s25 = ssub.s32 %s19, 2
      %s32 = sadd.s32 1, %s27
      %p33 = scmp.ge.s32.totalorder %s32, 2
      %s34 = scalar_select %p33, 0, %s32
      %s35 = sadd.s32 1, %s26
      %s36 = scalar_select %p33, %s35, %s26
      %p37 = scmp.ge.s32.totalorder %s36, 1
      %s38 = scalar_select %p37, 0, %s36
      %s39 = smul.u32 %s26, 2
      %s40 = sadd.s32 %s39, %s27
      %p41 = scmp.lt.s32.totalorder %s40, 1
      %s42 = scalar_select %p41, %s40, 1
      %s43 = smul.u32 %s38, 2
      %s44 = sadd.s32 %s43, %s34
      %p45 = scmp.lt.s32.totalorder %s44, 1
      %s46 = scalar_select %p45, %s44, 1
      %s47 = ssub.s32 %s42, %s46
      %p48 = scmp.eq.s32.totalorder %s47, 0
      %s50 = sadd.s32 %s49, 1
      %s51 = scalar_select %p48, %s49, %s50
      %p54 = pneg %p48
      %p55 = scmp.eq.s32.totalorder %s19, 1
      %p56 = por %p54, %p55
      %p57 = scmp.ne.s32.totalorder %s49, %s52
      %p58 = scmp.eq.s32.totalorder %s19, 0
      %p59 = por %p57, %p58
      %p60 = scmp.ne.s32.totalorder %s49, %s52
      %p61 = scmp.eq.s32.totalorder %s24, 1
      %p62 = por %p60, %p61
      %p63 = scmp.ne.s32.totalorder %s52, %s53
      %p64 = scmp.eq.s32.totalorder %s24, 0
      %p65 = por %p63, %p64
      %p66 = scmp.ne.s32.totalorder %s52, %s53
      %p67 = scmp.eq.s32.totalorder %s25, 1
      %p68 = por %p66, %p67
      %p70 = scmp.ne.s32.totalorder %s53, %s69
      %p71 = scmp.eq.s32.totalorder %s25, 0
      %p72 = por %p70, %p71
      %s73 = smul.u32 %s26, 2
      %s74 = sadd.s32 %s73, %s27
      %p75 = scmp.lt.s32.totalorder %s74, 1
      %s76 = scalar_select %p75, %s74, 1
      %s77 = smul.u32 %s38, 2
      %s78 = sadd.s32 %s77, %s34
      %p79 = scmp.lt.s32.totalorder %s78, 1
      %s80 = scalar_select %p79, %s78, 1
      %s81 = ssub.s32 %s76, %s80
      %p82 = scmp.eq.s32.totalorder %s81, 0
      %s84 = sadd.s32 %s83, 1
      %s85 = scalar_select %p82, %s83, %s84
      %p88 = pneg %p82
      %p89 = scmp.eq.s32.totalorder %s19, 1
      %p90 = por %p88, %p89
      %p91 = scmp.ne.s32.totalorder %s83, %s86
      %p92 = scmp.eq.s32.totalorder %s19, 0
      %p93 = por %p91, %p92
      %p94 = scmp.ne.s32.totalorder %s83, %s86
      %p95 = scmp.eq.s32.totalorder %s24, 1
      %p96 = por %p94, %p95
      %p97 = scmp.ne.s32.totalorder %s86, %s87
      %p98 = scmp.eq.s32.totalorder %s24, 0
      %p99 = por %p97, %p98
      %p100 = scmp.ne.s32.totalorder %s86, %s87
      %p101 = scmp.eq.s32.totalorder %s25, 1
      %p102 = por %p100, %p101
      %p104 = scmp.ne.s32.totalorder %s87, %s103
      %p105 = scmp.eq.s32.totalorder %s25, 0
      %p106 = por %p104, %p105
      %s107 = smul.u32 %s26, 2
      %s108 = sadd.s32 %s107, %s27
      %p109 = scmp.lt.s32.totalorder %s108, 1
      %s110 = scalar_select %p109, %s108, 1
      %s111 = smul.u32 %s38, 2
      %s112 = sadd.s32 %s111, %s34
      %p113 = scmp.lt.s32.totalorder %s112, 1
      %s114 = scalar_select %p113, %s112, 1
      %s115 = ssub.s32 %s110, %s114
      %p116 = scmp.eq.s32.totalorder %s115, 0
      %s118 = sadd.s32 %s117, 1
      %s119 = scalar_select %p116, %s117, %s118
      %p122 = pneg %p116
      %p123 = scmp.eq.s32.totalorder %s19, 1
      %p124 = por %p122, %p123
      %p125 = scmp.ne.s32.totalorder %s117, %s120
      %p126 = scmp.eq.s32.totalorder %s19, 0
      %p127 = por %p125, %p126
      %p128 = scmp.ne.s32.totalorder %s117, %s120
      %p129 = scmp.eq.s32.totalorder %s24, 1
      %p130 = por %p128, %p129
      %p131 = scmp.ne.s32.totalorder %s120, %s121
      %p132 = scmp.eq.s32.totalorder %s24, 0
      %p133 = por %p131, %p132
      %p134 = scmp.ne.s32.totalorder %s120, %s121
      %p135 = scmp.eq.s32.totalorder %s25, 1
      %p136 = por %p134, %p135
      %p138 = scmp.ne.s32.totalorder %s121, %s137
      %p139 = scmp.eq.s32.totalorder %s25, 0
      %p140 = por %p138, %p139
      %s141 = ssub.s32 %s26, %s38
      %p142 = scmp.eq.s32.totalorder %s141, 0
      %s144 = sadd.s32 %s143, 1
      %s145 = scalar_select %p142, %s143, %s144
      %p148 = pneg %p142
      %p149 = scmp.eq.s32.totalorder %s19, 1
      %p150 = por %p148, %p149
      %p151 = scmp.ne.s32.totalorder %s143, %s146
      %p152 = scmp.eq.s32.totalorder %s19, 0
      %p153 = por %p151, %p152
      %p154 = scmp.ne.s32.totalorder %s143, %s146
      %p155 = scmp.eq.s32.totalorder %s24, 1
      %p156 = por %p154, %p155
      %p157 = scmp.ne.s32.totalorder %s146, %s147
      %p158 = scmp.eq.s32.totalorder %s24, 0
      %p159 = por %p157, %p158
      %p160 = scmp.ne.s32.totalorder %s146, %s147
      %p161 = scmp.eq.s32.totalorder %s25, 1
      %p162 = por %p160, %p161
      %p164 = scmp.ne.s32.totalorder %s147, %s163
      %p165 = scmp.eq.s32.totalorder %s25, 0
      %p166 = por %p164, %p165
      %s167 = ssub.s32 %s26, %s38
      %p168 = scmp.eq.s32.totalorder %s167, 0
      %s170 = sadd.s32 %s169, 1
      %s171 = scalar_select %p168, %s169, %s170
      %p174 = pneg %p168
      %p175 = scmp.eq.s32.totalorder %s19, 1
      %p176 = por %p174, %p175
      %p177 = scmp.ne.s32.totalorder %s169, %s172
      %p178 = scmp.eq.s32.totalorder %s19, 0
      %p179 = por %p177, %p178
      %p180 = scmp.ne.s32.totalorder %s169, %s172
      %p181 = scmp.eq.s32.totalorder %s24, 1
      %p182 = por %p180, %p181
      %p183 = scmp.ne.s32.totalorder %s172, %s173
      %p184 = scmp.eq.s32.totalorder %s24, 0
      %p185 = por %p183, %p184
      %p186 = scmp.ne.s32.totalorder %s172, %s173
      %p187 = scmp.eq.s32.totalorder %s25, 1
      %p188 = por %p186, %p187
      %p190 = scmp.ne.s32.totalorder %s173, %s189
      %p191 = scmp.eq.s32.totalorder %s25, 0
      %p192 = por %p190, %p191
      %p193 = scmp.le.s32.totalorder 1, %s19
      %p194 = scmp.lt.s32.totalorder %s19, 3
      %p195 = pnand %p193, %p194
      %p196 = pneg %p195
      // Predicated region
      $region9: #{tpu_custom_call.1} parent=5 // pred_check
        _
      $region10: #{tpu_custom_call.1} parent=5 // pred_check_branch
        %198 = sbr.rel (%p195) target = $region12
      $region11: #{tpu_custom_call.1} parent=5 // pred_region
        %s199 = ssub.s32 %s19, 1
      $region12: #{tpu_custom_call.1} parent=5 // pred_fallthru
        _
      %p200 = scmp.lt.s32.totalorder %s19, 2
      // Predicated region
      $region13: #{tpu_custom_call.1} parent=5 // pred_check
        %p201 = pneg %p200
      $region14: #{tpu_custom_call.1} parent=5 // pred_check_branch
        %203 = sbr.rel (%p201) target = $region16
      $region15: #{tpu_custom_call.1} parent=5 // pred_region
        // Predicated region
        $region17: #{tpu_custom_call.1} parent=15 // pred_check
          %p204 = pneg %p59
        $region18: #{tpu_custom_call.1} parent=15 // pred_check_branch
          %206 = sbr.rel (%p204) target = $region20
        $region19: #{tpu_custom_call.1} parent=15 // pred_region
          %s207 = sand.u32 %s49, 1
          %s208 = scalar_lea.sflag [#allocation3], %s207
          %s209 = sand.u32 %s49, 1
          %s210 = smul.addr %s209, 2048
          %s211 = scalar_lea.vmem [#allocation2], %s210
          %s212 = smul.u32 %s26, 2
          %s213 = sadd.s32 %s212, %s27
          %p214 = scmp.lt.s32.totalorder %s213, 1
          %s215 = scalar_select %p214, %s213, 1
          %s216 = smul.u32 256, %s215
          %s217 = ssub.s32 440, %s216
          %p218 = scmp.lt.s32.totalorder %s217, 256
          %s219 = scalar_select %p218, %s217, 256
          %s220 = smul.u32 128, %s219
          %s222 = ssub.s32 32768, %s220
          %223 = vsyncadd %s208, %s222
          %p224 = scmp.ne.s32.totalorder 0, %s220
          %s225 = smul.addr %s216, 128
          %s226 = scalar_lea.hbm %s0, %s225
          %s227 = smul.u32 8, %s219
          %s228 = sshll.u32 %s211, 4
          %s229 = int_to_ptr.vmem [resolvable:$true] %s228
          %s230 = sshll.u32 %s227, 4
          %234 = dma.hbm_to_vmem [thread:$0]  (%p224), %s226, %s230, %s229, %s208, 128, 128, 8
        $region20: #{tpu_custom_call.1} parent=15 // pred_fallthru
          _
        // Predicated region
        $region21: #{tpu_custom_call.1} parent=15 // pred_check
          %p235 = pneg %p93
        $region22: #{tpu_custom_call.1} parent=15 // pred_check_branch
          %237 = sbr.rel (%p235) target = $region24
        $region23: #{tpu_custom_call.1} parent=15 // pred_region
          %s238 = sand.u32 %s19, 1
          %s239 = scalar_lea.sflag [#allocation6], %s238
          %s240 = sand.u32 %s83, 1
          %s241 = smul.addr %s240, 2048
          %s242 = scalar_lea.vmem [#allocation5], %s241
          %s243 = smul.u32 %s26, 2
          %s244 = sadd.s32 %s243, %s27
          %p245 = scmp.lt.s32.totalorder %s244, 1
          %s246 = scalar_select %p245, %s244, 1
          %s247 = smul.u32 256, %s246
          %s248 = ssub.s32 440, %s247
          %p249 = scmp.lt.s32.totalorder %s248, 256
          %s250 = scalar_select %p249, %s248, 256
          %s251 = smul.u32 128, %s250
          %s253 = ssub.s32 32768, %s251
          %254 = vsyncadd %s239, %s253
          %p255 = scmp.ne.s32.totalorder 0, %s251
          %s256 = smul.addr %s247, 128
          %s257 = scalar_lea.hbm %s1, %s256
          %s258 = smul.u32 8, %s250
          %s259 = sshll.u32 %s242, 4
          %s260 = int_to_ptr.vmem [resolvable:$true] %s259
          %s261 = sshll.u32 %s258, 4
          %265 = dma.hbm_to_vmem [thread:$0]  (%p255), %s257, %s261, %s260, %s239, 128, 128, 8
        $region24: #{tpu_custom_call.1} parent=15 // pred_fallthru
          _
        // Predicated region
        $region25: #{tpu_custom_call.1} parent=15 // pred_check
          %p266 = pneg %p127
        $region26: #{tpu_custom_call.1} parent=15 // pred_check_branch
          %268 = sbr.rel (%p266) target = $region28
        $region27: #{tpu_custom_call.1} parent=15 // pred_region
          %s269 = sand.u32 %s19, 1
          %s270 = scalar_lea.sflag [#allocation6], %s269
          %s271 = sand.u32 %s117, 1
          %s272 = smul.addr %s271, 2048
          %s273 = scalar_lea.vmem [#allocation7], %s272
          %s274 = smul.u32 %s26, 2
          %s275 = sadd.s32 %s274, %s27
          %p276 = scmp.lt.s32.totalorder %s275, 1
          %s277 = scalar_select %p276, %s275, 1
          %s278 = smul.u32 256, %s277
          %s279 = ssub.s32 440, %s278
          %p280 = scmp.lt.s32.totalorder %s279, 256
          %s281 = scalar_select %p280, %s279, 256
          %s282 = smul.u32 128, %s281
          %s284 = ssub.s32 32768, %s282
          %285 = vsyncadd %s270, %s284
          %p286 = scmp.ne.s32.totalorder 0, %s282
          %s287 = smul.addr %s278, 128
          %s288 = scalar_lea.hbm %s2, %s287
          %s289 = smul.u32 8, %s281
          %s290 = sshll.u32 %s273, 4
          %s291 = int_to_ptr.vmem [resolvable:$true] %s290
          %s292 = sshll.u32 %s289, 4
          %296 = dma.hbm_to_vmem [thread:$0]  (%p286), %s288, %s292, %s291, %s270, 128, 128, 8
        $region28: #{tpu_custom_call.1} parent=15 // pred_fallthru
          _
      $region16: #{tpu_custom_call.1} parent=5 // pred_fallthru
        _
      %p297 = scmp.le.s32.totalorder 1, %s19
      %p298 = scmp.lt.s32.totalorder %s19, 3
      %p299 = pnand %p297, %p298
      %p300 = pneg %p299
      // Predicated region
      $region29: #{tpu_custom_call.1} parent=5 // pred_check
        _
      $region30: #{tpu_custom_call.1} parent=5 // pred_check_branch
        %302 = sbr.rel (%p299) target = $region32
      $region31: #{tpu_custom_call.1} parent=5 // pred_region
        %s303 = ssub.s32 %s19, 1
        %s304 = sand.u32 %s52, 1
        %s305 = scalar_lea.sflag [#allocation3], %s304
        %s306 = sand.u32 %s52, 1
        %s307 = smul.addr %s306, 2048
        %s308 = scalar_lea.vmem [#allocation2], %s307
        // Predicated region
        $region33: #{tpu_custom_call.1} parent=31 // pred_check
          %p309 = pneg %p65
        $region34: #{tpu_custom_call.1} parent=31 // pred_check_branch
          %311 = sbr.rel (%p309) target = $region36
        $region35: #{tpu_custom_call.1} parent=31 // pred_region
          %312 = dma.done %s305, 32768
        $region36: #{tpu_custom_call.1} parent=31 // pred_fallthru
          _
        %s313 = sand.u32 %s24, 1
        %s314 = scalar_lea.sflag [#allocation6], %s313
        %s315 = sand.u32 %s86, 1
        %s316 = smul.addr %s315, 2048
        %s317 = scalar_lea.vmem [#allocation5], %s316
        // Predicated region
        $region37: #{tpu_custom_call.1} parent=31 // pred_check
          %p318 = pneg %p99
        $region38: #{tpu_custom_call.1} parent=31 // pred_check_branch
          %320 = sbr.rel (%p318) target = $region40
        $region39: #{tpu_custom_call.1} parent=31 // pred_region
          %321 = dma.done %s314, 32768
        $region40: #{tpu_custom_call.1} parent=31 // pred_fallthru
          _
        %s322 = sand.u32 %s24, 1
        %s323 = scalar_lea.sflag [#allocation6], %s322
        %s324 = sand.u32 %s120, 1
        %s325 = smul.addr %s324, 2048
        %s326 = scalar_lea.vmem [#allocation7], %s325
        // Predicated region
        $region41: #{tpu_custom_call.1} parent=31 // pred_check
          %p327 = pneg %p133
        $region42: #{tpu_custom_call.1} parent=31 // pred_check_branch
          %329 = sbr.rel (%p327) target = $region44
        $region43: #{tpu_custom_call.1} parent=31 // pred_region
          %330 = dma.done %s323, 32768
        $region44: #{tpu_custom_call.1} parent=31 // pred_fallthru
          _
        %s331 = sand.u32 %s52, 1
        %s332 = scalar_lea.sflag [#allocation3], %s331
        %s333 = sand.u32 %s52, 1
        %s334 = smul.addr %s333, 2048
        %s335 = scalar_lea.vmem [#allocation2], %s334
        %p336 = pneg %p65
        %p337 = pneg %p62
        %s338 = sand.u32 %s24, 1
        %s339 = scalar_lea.sflag [#allocation6], %s338
        %s340 = sand.u32 %s86, 1
        %s341 = smul.addr %s340, 2048
        %s342 = scalar_lea.vmem [#allocation5], %s341
        %p343 = pneg %p99
        %p344 = pneg %p96
        %s345 = sand.u32 %s24, 1
        %s346 = scalar_lea.sflag [#allocation6], %s345
        %s347 = sand.u32 %s120, 1
        %s348 = smul.addr %s347, 2048
        %s349 = scalar_lea.vmem [#allocation7], %s348
        %p350 = pneg %p133
        %p351 = pneg %p130
        %p352 = pneg %p159
        %p353 = pneg %p156
        %p354 = pneg %p185
        %p355 = pneg %p182
        %s356 = smul.u32 %s28, 2
        %s357 = sadd.s32 %s356, %s29
        %p358 = scmp.lt.s32.totalorder %s357, 1
        %s359 = scalar_select %p358, %s357, 1
        %s360 = smul.u32 256, %s359
        %s361 = ssub.s32 440, %s360
        %p362 = scmp.lt.s32.totalorder %s361, 256
        %s363 = scalar_select %p362, %s361, 256
        %s364 = smul.u32 128, %s363
        %s365 = smul.u32 %s28, 2
        %s366 = sadd.s32 %s365, %s29
        %p367 = scmp.lt.s32.totalorder %s366, 1
        %s368 = scalar_select %p367, %s366, 1
        %s369 = smul.u32 256, %s368
        %s370 = ssub.s32 440, %s369
        %p371 = scmp.lt.s32.totalorder %s370, 256
        %s372 = scalar_select %p371, %s370, 256
        %s373 = smul.u32 128, %s372
        %s374 = smul.u32 %s28, 2
        %s375 = sadd.s32 %s374, %s29
        %p376 = scmp.lt.s32.totalorder %s375, 1
        %s377 = scalar_select %p376, %s375, 1
        %s378 = smul.u32 256, %s377
        %s379 = ssub.s32 440, %s378
        %p380 = scmp.lt.s32.totalorder %s379, 256
        %s381 = scalar_select %p380, %s379, 256
        %s382 = smul.u32 128, %s381
        %p383 = scmp.eq.s32.totalorder %s29, 0
        // Predicated region
        $region45: #{tpu_custom_call.1} parent=31 // pred_check
          %p384 = pneg %p383
        $region46: #{tpu_custom_call.1} parent=31 // pred_check_branch
          %386 = sbr.rel (%p384) target = $region48
        $region47: #{tpu_custom_call.1} parent=31 // pred_region
          %387 = vst [vmem:[#allocation8] sm:$0xff] 0.0
          %388 = vst [vmem:[#allocation9] sm:$0xff] 0.0
        $region48: #{tpu_custom_call.1} parent=31 // pred_fallthru
          _
        %s389 = smul.u32 %s28, 2
        %s390 = sadd.s32 %s389, %s29
        %s391 = smul.u32 %s390, 2048
        %s392 = sadd.s32 %s391, 2048
        %p393 = scmp.le.s32.totalorder %s392, 3520
        // Predicated region
        $region49: #{tpu_custom_call.1} parent=31 // pred_check
          %p394 = pneg %p393
        $region50: #{tpu_custom_call.1} parent=31 // pred_check_branch
          %396 = sbr.rel (%p394) target = $region52
        $region51: #{tpu_custom_call.1} parent=31 // pred_region
          loop: start=0, step=1, limit=16
          $region53: #{tpu_custom_call.1} parent=51 // loop_pre_header
            _
          $region54: #{tpu_custom_call.1} parent=51 // loop_header
            %s398 = sphi 0, %s402
            %p399 = scmp.ge.s32.totalorder %s398, 16
            %v403 = vphi 0.0, %v648
            %v404 = vphi 0.0, %v664
          $region55: #{tpu_custom_call.1} parent=51 // loop_header_branch
            %401 = sbr.rel (%p399) target = $region59
          $region56: #{tpu_custom_call.1} parent=51 // loop_body
            %s405 = smul.u32 %s398, 128
            %s406 = scalar_lea.vmem %s308, %s405 [#allocation2]
            %v407 = vld [vmem:[%s406] sm:$0xff]
            %v408 = vld [vmem:[%s406 + $0x8] sm:$0xff]
            %v409 = vld [vmem:[%s406 + $0x10] sm:$0xff]
            %v410 = vld [vmem:[%s406 + $0x18] sm:$0xff]
            %v411 = vld [vmem:[%s406 + $0x20] sm:$0xff]
            %v412 = vld [vmem:[%s406 + $0x28] sm:$0xff]
            %v413 = vld [vmem:[%s406 + $0x30] sm:$0xff]
            %v414 = vld [vmem:[%s406 + $0x38] sm:$0xff]
            %v415 = vld [vmem:[%s406 + $0x40] sm:$0xff]
            %v416 = vld [vmem:[%s406 + $0x48] sm:$0xff]
            %v417 = vld [vmem:[%s406 + $0x50] sm:$0xff]
            %v418 = vld [vmem:[%s406 + $0x58] sm:$0xff]
            %v419 = vld [vmem:[%s406 + $0x60] sm:$0xff]
            %v420 = vld [vmem:[%s406 + $0x68] sm:$0xff]
            %v421 = vld [vmem:[%s406 + $0x70] sm:$0xff]
            %v422 = vld [vmem:[%s406 + $0x78] sm:$0xff]
            %s423 = scalar_lea.vmem %s317, %s405 [#allocation5]
            %v424 = vld [vmem:[%s423] sm:$0xff]
            %v425 = vld [vmem:[%s423 + $0x8] sm:$0xff]
            %v426 = vld [vmem:[%s423 + $0x10] sm:$0xff]
            %v427 = vld [vmem:[%s423 + $0x18] sm:$0xff]
            %v428 = vld [vmem:[%s423 + $0x20] sm:$0xff]
            %v429 = vld [vmem:[%s423 + $0x28] sm:$0xff]
            %v430 = vld [vmem:[%s423 + $0x30] sm:$0xff]
            %v431 = vld [vmem:[%s423 + $0x38] sm:$0xff]
            %v432 = vld [vmem:[%s423 + $0x40] sm:$0xff]
            %v433 = vld [vmem:[%s423 + $0x48] sm:$0xff]
            %v434 = vld [vmem:[%s423 + $0x50] sm:$0xff]
            %v435 = vld [vmem:[%s423 + $0x58] sm:$0xff]
            %v436 = vld [vmem:[%s423 + $0x60] sm:$0xff]
            %v437 = vld [vmem:[%s423 + $0x68] sm:$0xff]
            %v438 = vld [vmem:[%s423 + $0x70] sm:$0xff]
            %v439 = vld [vmem:[%s423 + $0x78] sm:$0xff]
            %s440 = scalar_lea.vmem %s326, %s405 [#allocation7]
            %v441 = vld [vmem:[%s440] sm:$0xff]
            %v442 = vld [vmem:[%s440 + $0x8] sm:$0xff]
            %v443 = vld [vmem:[%s440 + $0x10] sm:$0xff]
            %v444 = vld [vmem:[%s440 + $0x18] sm:$0xff]
            %v445 = vld [vmem:[%s440 + $0x20] sm:$0xff]
            %v446 = vld [vmem:[%s440 + $0x28] sm:$0xff]
            %v447 = vld [vmem:[%s440 + $0x30] sm:$0xff]
            %v448 = vld [vmem:[%s440 + $0x38] sm:$0xff]
            %v449 = vld [vmem:[%s440 + $0x40] sm:$0xff]
            %v450 = vld [vmem:[%s440 + $0x48] sm:$0xff]
            %v451 = vld [vmem:[%s440 + $0x50] sm:$0xff]
            %v452 = vld [vmem:[%s440 + $0x58] sm:$0xff]
            %v453 = vld [vmem:[%s440 + $0x60] sm:$0xff]
            %v454 = vld [vmem:[%s440 + $0x68] sm:$0xff]
            %v455 = vld [vmem:[%s440 + $0x70] sm:$0xff]
            %v456 = vld [vmem:[%s440 + $0x78] sm:$0xff]
            %v457 = vsub.f32 %v407, %v424
            %v458 = vsub.f32 %v408, %v425
            %v459 = vsub.f32 %v409, %v426
            %v460 = vsub.f32 %v410, %v427
            %v461 = vsub.f32 %v411, %v428
            %v462 = vsub.f32 %v412, %v429
            %v463 = vsub.f32 %v413, %v430
            %v464 = vsub.f32 %v414, %v431
            %v465 = vsub.f32 %v415, %v432
            %v466 = vsub.f32 %v416, %v433
            %v467 = vsub.f32 %v417, %v434
            %v468 = vsub.f32 %v418, %v435
            %v469 = vsub.f32 %v419, %v436
            %v470 = vsub.f32 %v420, %v437
            %v471 = vsub.f32 %v421, %v438
            %v472 = vsub.f32 %v422, %v439
            %v473 = vand.u32 2147483647, %v457
            %v474 = vand.u32 2147483647, %v458
            %v475 = vand.u32 2147483647, %v459
            %v476 = vand.u32 2147483647, %v460
            %v477 = vand.u32 2147483647, %v461
            %v478 = vand.u32 2147483647, %v462
            %v479 = vand.u32 2147483647, %v463
            %v480 = vand.u32 2147483647, %v464
            %v481 = vand.u32 2147483647, %v465
            %v482 = vand.u32 2147483647, %v466
            %v483 = vand.u32 2147483647, %v467
            %v484 = vand.u32 2147483647, %v468
            %v485 = vand.u32 2147483647, %v469
            %v486 = vand.u32 2147483647, %v470
            %v487 = vand.u32 2147483647, %v471
            %v488 = vand.u32 2147483647, %v472
            %v489 = vmin.f32 %v473, 0.11111111
            %v490 = vmin.f32 %v474, 0.11111111
            %v491 = vmin.f32 %v475, 0.11111111
            %v492 = vmin.f32 %v476, 0.11111111
            %v493 = vmin.f32 %v477, 0.11111111
            %v494 = vmin.f32 %v478, 0.11111111
            %v495 = vmin.f32 %v479, 0.11111111
            %v496 = vmin.f32 %v480, 0.11111111
            %v497 = vmin.f32 %v481, 0.11111111
            %v498 = vmin.f32 %v482, 0.11111111
            %v499 = vmin.f32 %v483, 0.11111111
            %v500 = vmin.f32 %v484, 0.11111111
            %v501 = vmin.f32 %v485, 0.11111111
            %v502 = vmin.f32 %v486, 0.11111111
            %v503 = vmin.f32 %v487, 0.11111111
            %v504 = vmin.f32 %v488, 0.11111111
            %v505 = vmul.f32 %v489, 4.5
            %v506 = vmul.f32 %v490, 4.5
            %v507 = vmul.f32 %v491, 4.5
            %v508 = vmul.f32 %v492, 4.5
            %v509 = vmul.f32 %v493, 4.5
            %v510 = vmul.f32 %v494, 4.5
            %v511 = vmul.f32 %v495, 4.5
            %v512 = vmul.f32 %v496, 4.5
            %v513 = vmul.f32 %v497, 4.5
            %v514 = vmul.f32 %v498, 4.5
            %v515 = vmul.f32 %v499, 4.5
            %v516 = vmul.f32 %v500, 4.5
            %v517 = vmul.f32 %v501, 4.5
            %v518 = vmul.f32 %v502, 4.5
            %v519 = vmul.f32 %v503, 4.5
            %v520 = vmul.f32 %v504, 4.5
            %v521 = vmul.f32 %v505, %v489
            %v522 = vmul.f32 %v506, %v490
            %v523 = vmul.f32 %v507, %v491
            %v524 = vmul.f32 %v508, %v492
            %v525 = vmul.f32 %v509, %v493
            %v526 = vmul.f32 %v510, %v494
            %v527 = vmul.f32 %v511, %v495
            %v528 = vmul.f32 %v512, %v496
            %v529 = vmul.f32 %v513, %v497
            %v530 = vmul.f32 %v514, %v498
            %v531 = vmul.f32 %v515, %v499
            %v532 = vmul.f32 %v516, %v500
            %v533 = vmul.f32 %v517, %v501
            %v534 = vmul.f32 %v518, %v502
            %v535 = vmul.f32 %v519, %v503
            %v536 = vmul.f32 %v520, %v504
            %v537 = vsub.f32 %v473, 0.11111111
            %v538 = vsub.f32 %v474, 0.11111111
            %v539 = vsub.f32 %v475, 0.11111111
            %v540 = vsub.f32 %v476, 0.11111111
            %v541 = vsub.f32 %v477, 0.11111111
            %v542 = vsub.f32 %v478, 0.11111111
            %v543 = vsub.f32 %v479, 0.11111111
            %v544 = vsub.f32 %v480, 0.11111111
            %v545 = vsub.f32 %v481, 0.11111111
            %v546 = vsub.f32 %v482, 0.11111111
            %v547 = vsub.f32 %v483, 0.11111111
            %v548 = vsub.f32 %v484, 0.11111111
            %v549 = vsub.f32 %v485, 0.11111111
            %v550 = vsub.f32 %v486, 0.11111111
            %v551 = vsub.f32 %v487, 0.11111111
            %v552 = vsub.f32 %v488, 0.11111111
            %v553 = vmax.f32 %v537, 0.0
            %v554 = vmax.f32 %v538, 0.0
            %v555 = vmax.f32 %v539, 0.0
            %v556 = vmax.f32 %v540, 0.0
            %v557 = vmax.f32 %v541, 0.0
            %v558 = vmax.f32 %v542, 0.0
            %v559 = vmax.f32 %v543, 0.0
            %v560 = vmax.f32 %v544, 0.0
            %v561 = vmax.f32 %v545, 0.0
            %v562 = vmax.f32 %v546, 0.0
            %v563 = vmax.f32 %v547, 0.0
            %v564 = vmax.f32 %v548, 0.0
            %v565 = vmax.f32 %v549, 0.0
            %v566 = vmax.f32 %v550, 0.0
            %v567 = vmax.f32 %v551, 0.0
            %v568 = vmax.f32 %v552, 0.0
            %v569 = vadd.f32 %v521, %v553
            %v570 = vadd.f32 %v522, %v554
            %v571 = vadd.f32 %v523, %v555
            %v572 = vadd.f32 %v524, %v556
            %v573 = vadd.f32 %v525, %v557
            %v574 = vadd.f32 %v526, %v558
            %v575 = vadd.f32 %v527, %v559
            %v576 = vadd.f32 %v528, %v560
            %v577 = vadd.f32 %v529, %v561
            %v578 = vadd.f32 %v530, %v562
            %v579 = vadd.f32 %v531, %v563
            %v580 = vadd.f32 %v532, %v564
            %v581 = vadd.f32 %v533, %v565
            %v582 = vadd.f32 %v534, %v566
            %v583 = vadd.f32 %v535, %v567
            %v584 = vadd.f32 %v536, %v568
            %v585 = vmul.f32 %v569, %v441
            %v586 = vmul.f32 %v570, %v442
            %v587 = vmul.f32 %v571, %v443
            %v588 = vmul.f32 %v572, %v444
            %v589 = vmul.f32 %v573, %v445
            %v590 = vmul.f32 %v574, %v446
            %v591 = vmul.f32 %v575, %v447
            %v592 = vmul.f32 %v576, %v448
            %v593 = vmul.f32 %v577, %v449
            %v594 = vmul.f32 %v578, %v450
            %v595 = vmul.f32 %v579, %v451
            %v596 = vmul.f32 %v580, %v452
            %v597 = vmul.f32 %v581, %v453
            %v598 = vmul.f32 %v582, %v454
            %v599 = vmul.f32 %v583, %v455
            %v600 = vmul.f32 %v584, %v456
            %vm601 = vcmp.gt.f32.partialorder %v441, 0.0
            %vm602 = vcmp.gt.f32.partialorder %v442, 0.0
            %vm603 = vcmp.gt.f32.partialorder %v443, 0.0
            %vm604 = vcmp.gt.f32.partialorder %v444, 0.0
            %vm605 = vcmp.gt.f32.partialorder %v445, 0.0
            %vm606 = vcmp.gt.f32.partialorder %v446, 0.0
            %vm607 = vcmp.gt.f32.partialorder %v447, 0.0
            %vm608 = vcmp.gt.f32.partialorder %v448, 0.0
            %vm609 = vcmp.gt.f32.partialorder %v449, 0.0
            %vm610 = vcmp.gt.f32.partialorder %v450, 0.0
            %vm611 = vcmp.gt.f32.partialorder %v451, 0.0
            %vm612 = vcmp.gt.f32.partialorder %v452, 0.0
            %vm613 = vcmp.gt.f32.partialorder %v453, 0.0
            %vm614 = vcmp.gt.f32.partialorder %v454, 0.0
            %vm615 = vcmp.gt.f32.partialorder %v455, 0.0
            %vm616 = vcmp.gt.f32.partialorder %v456, 0.0
            %v617 = vsel %vm601, 1.0, 0.0
            %v618 = vsel %vm602, 1.0, 0.0
            %v619 = vsel %vm603, 1.0, 0.0
            %v620 = vsel %vm604, 1.0, 0.0
            %v621 = vsel %vm605, 1.0, 0.0
            %v622 = vsel %vm606, 1.0, 0.0
            %v623 = vsel %vm607, 1.0, 0.0
            %v624 = vsel %vm608, 1.0, 0.0
            %v625 = vsel %vm609, 1.0, 0.0
            %v626 = vsel %vm610, 1.0, 0.0
            %v627 = vsel %vm611, 1.0, 0.0
            %v628 = vsel %vm612, 1.0, 0.0
            %v629 = vsel %vm613, 1.0, 0.0
            %v630 = vsel %vm614, 1.0, 0.0
            %v631 = vsel %vm615, 1.0, 0.0
            %v632 = vsel %vm616, 1.0, 0.0
            %v633 = vadd.f32 %v585, %v586
            %v634 = vadd.f32 %v633, %v587
            %v635 = vadd.f32 %v634, %v588
            %v636 = vadd.f32 %v635, %v589
            %v637 = vadd.f32 %v636, %v590
            %v638 = vadd.f32 %v637, %v591
            %v639 = vadd.f32 %v638, %v592
            %v640 = vadd.f32 %v639, %v593
            %v641 = vadd.f32 %v640, %v594
            %v642 = vadd.f32 %v641, %v595
            %v643 = vadd.f32 %v642, %v596
            %v644 = vadd.f32 %v643, %v597
            %v645 = vadd.f32 %v644, %v598
            %v646 = vadd.f32 %v645, %v599
            %v647 = vadd.f32 %v646, %v600
            %v648 = vadd.f32 %v403, %v647
            %v649 = vadd.f32 %v617, %v618
            %v650 = vadd.f32 %v649, %v619
            %v651 = vadd.f32 %v650, %v620
            %v652 = vadd.f32 %v651, %v621
            %v653 = vadd.f32 %v652, %v622
            %v654 = vadd.f32 %v653, %v623
            %v655 = vadd.f32 %v654, %v624
            %v656 = vadd.f32 %v655, %v625
            %v657 = vadd.f32 %v656, %v626
            %v658 = vadd.f32 %v657, %v627
            %v659 = vadd.f32 %v658, %v628
            %v660 = vadd.f32 %v659, %v629
            %v661 = vadd.f32 %v660, %v630
            %v662 = vadd.f32 %v661, %v631
            %v663 = vadd.f32 %v662, %v632
            %v664 = vadd.f32 %v404, %v663
          $region57: #{tpu_custom_call.1} parent=51 // loop_footer
            %s402 = sadd.s32 1, %s398
          $region58: #{tpu_custom_call.1} parent=51 // loop_footer_branch
            %397 = sbr.rel target = $region54
          $region59: #{tpu_custom_call.1} parent=51 // loop_exit
            _
          %v665 = vld [vmem:[#allocation8] sm:$0xff]
          %v666 = vadd.f32 %v665, %v403
          %667 = vst [vmem:[#allocation8] sm:$0xff] %v666
          %v668 = vld [vmem:[#allocation9] sm:$0xff]
          %v669 = vadd.f32 %v668, %v404
          %670 = vst [vmem:[#allocation9] sm:$0xff] %v669
        $region52: #{tpu_custom_call.1} parent=31 // pred_fallthru
          _
        %p671 = scmp.gt.s32.totalorder %s392, 3520
        // Predicated region
        $region60: #{tpu_custom_call.1} parent=31 // pred_check
          %p672 = pneg %p671
        $region61: #{tpu_custom_call.1} parent=31 // pred_check_branch
          %674 = sbr.rel (%p672) target = $region63
        $region62: #{tpu_custom_call.1} parent=31 // pred_region
          loop: start=0, step=1, limit=16
          $region64: #{tpu_custom_call.1} parent=62 // loop_pre_header
            _
          $region65: #{tpu_custom_call.1} parent=62 // loop_header
            %s676 = sphi 0, %s680
            %p677 = scmp.ge.s32.totalorder %s676, 16
            %v681 = vphi 0.0, %v1009
            %v682 = vphi 0.0, %v1025
          $region66: #{tpu_custom_call.1} parent=62 // loop_header_branch
            %679 = sbr.rel (%p677) target = $region70
          $region67: #{tpu_custom_call.1} parent=62 // loop_body
            %s683 = smul.u32 %s676, 128
            %s684 = scalar_lea.vmem %s308, %s683 [#allocation2]
            %v685 = vld [vmem:[%s684] sm:$0xff]
            %v686 = vld [vmem:[%s684 + $0x8] sm:$0xff]
            %v687 = vld [vmem:[%s684 + $0x10] sm:$0xff]
            %v688 = vld [vmem:[%s684 + $0x18] sm:$0xff]
            %v689 = vld [vmem:[%s684 + $0x20] sm:$0xff]
            %v690 = vld [vmem:[%s684 + $0x28] sm:$0xff]
            %v691 = vld [vmem:[%s684 + $0x30] sm:$0xff]
            %v692 = vld [vmem:[%s684 + $0x38] sm:$0xff]
            %v693 = vld [vmem:[%s684 + $0x40] sm:$0xff]
            %v694 = vld [vmem:[%s684 + $0x48] sm:$0xff]
            %v695 = vld [vmem:[%s684 + $0x50] sm:$0xff]
            %v696 = vld [vmem:[%s684 + $0x58] sm:$0xff]
            %v697 = vld [vmem:[%s684 + $0x60] sm:$0xff]
            %v698 = vld [vmem:[%s684 + $0x68] sm:$0xff]
            %v699 = vld [vmem:[%s684 + $0x70] sm:$0xff]
            %v700 = vld [vmem:[%s684 + $0x78] sm:$0xff]
            %s701 = scalar_lea.vmem %s317, %s683 [#allocation5]
            %v702 = vld [vmem:[%s701] sm:$0xff]
            %v703 = vld [vmem:[%s701 + $0x8] sm:$0xff]
            %v704 = vld [vmem:[%s701 + $0x10] sm:$0xff]
            %v705 = vld [vmem:[%s701 + $0x18] sm:$0xff]
            %v706 = vld [vmem:[%s701 + $0x20] sm:$0xff]
            %v707 = vld [vmem:[%s701 + $0x28] sm:$0xff]
            %v708 = vld [vmem:[%s701 + $0x30] sm:$0xff]
            %v709 = vld [vmem:[%s701 + $0x38] sm:$0xff]
            %v710 = vld [vmem:[%s701 + $0x40] sm:$0xff]
            %v711 = vld [vmem:[%s701 + $0x48] sm:$0xff]
            %v712 = vld [vmem:[%s701 + $0x50] sm:$0xff]
            %v713 = vld [vmem:[%s701 + $0x58] sm:$0xff]
            %v714 = vld [vmem:[%s701 + $0x60] sm:$0xff]
            %v715 = vld [vmem:[%s701 + $0x68] sm:$0xff]
            %v716 = vld [vmem:[%s701 + $0x70] sm:$0xff]
            %v717 = vld [vmem:[%s701 + $0x78] sm:$0xff]
            %s718 = scalar_lea.vmem %s326, %s683 [#allocation7]
            %v719 = vld [vmem:[%s718] sm:$0xff]
            %v720 = vld [vmem:[%s718 + $0x8] sm:$0xff]
            %v721 = vld [vmem:[%s718 + $0x10] sm:$0xff]
            %v722 = vld [vmem:[%s718 + $0x18] sm:$0xff]
            %v723 = vld [vmem:[%s718 + $0x20] sm:$0xff]
            %v724 = vld [vmem:[%s718 + $0x28] sm:$0xff]
            %v725 = vld [vmem:[%s718 + $0x30] sm:$0xff]
            %v726 = vld [vmem:[%s718 + $0x38] sm:$0xff]
            %v727 = vld [vmem:[%s718 + $0x40] sm:$0xff]
            %v728 = vld [vmem:[%s718 + $0x48] sm:$0xff]
            %v729 = vld [vmem:[%s718 + $0x50] sm:$0xff]
            %v730 = vld [vmem:[%s718 + $0x58] sm:$0xff]
            %v731 = vld [vmem:[%s718 + $0x60] sm:$0xff]
            %v732 = vld [vmem:[%s718 + $0x68] sm:$0xff]
            %v733 = vld [vmem:[%s718 + $0x70] sm:$0xff]
            %v734 = vld [vmem:[%s718 + $0x78] sm:$0xff]
            %v735 = vsub.f32 %v685, %v702
            %v736 = vsub.f32 %v686, %v703
            %v737 = vsub.f32 %v687, %v704
            %v738 = vsub.f32 %v688, %v705
            %v739 = vsub.f32 %v689, %v706
            %v740 = vsub.f32 %v690, %v707
            %v741 = vsub.f32 %v691, %v708
            %v742 = vsub.f32 %v692, %v709
            %v743 = vsub.f32 %v693, %v710
            %v744 = vsub.f32 %v694, %v711
            %v745 = vsub.f32 %v695, %v712
            %v746 = vsub.f32 %v696, %v713
            %v747 = vsub.f32 %v697, %v714
            %v748 = vsub.f32 %v698, %v715
            %v749 = vsub.f32 %v699, %v716
            %v750 = vsub.f32 %v700, %v717
            %v751 = vand.u32 2147483647, %v735
            %v752 = vand.u32 2147483647, %v736
            %v753 = vand.u32 2147483647, %v737
            %v754 = vand.u32 2147483647, %v738
            %v755 = vand.u32 2147483647, %v739
            %v756 = vand.u32 2147483647, %v740
            %v757 = vand.u32 2147483647, %v741
            %v758 = vand.u32 2147483647, %v742
            %v759 = vand.u32 2147483647, %v743
            %v760 = vand.u32 2147483647, %v744
            %v761 = vand.u32 2147483647, %v745
            %v762 = vand.u32 2147483647, %v746
            %v763 = vand.u32 2147483647, %v747
            %v764 = vand.u32 2147483647, %v748
            %v765 = vand.u32 2147483647, %v749
            %v766 = vand.u32 2147483647, %v750
            %v767 = vmin.f32 %v751, 0.11111111
            %v768 = vmin.f32 %v752, 0.11111111
            %v769 = vmin.f32 %v753, 0.11111111
            %v770 = vmin.f32 %v754, 0.11111111
            %v771 = vmin.f32 %v755, 0.11111111
            %v772 = vmin.f32 %v756, 0.11111111
            %v773 = vmin.f32 %v757, 0.11111111
            %v774 = vmin.f32 %v758, 0.11111111
            %v775 = vmin.f32 %v759, 0.11111111
            %v776 = vmin.f32 %v760, 0.11111111
            %v777 = vmin.f32 %v761, 0.11111111
            %v778 = vmin.f32 %v762, 0.11111111
            %v779 = vmin.f32 %v763, 0.11111111
            %v780 = vmin.f32 %v764, 0.11111111
            %v781 = vmin.f32 %v765, 0.11111111
            %v782 = vmin.f32 %v766, 0.11111111
            %v783 = vmul.f32 %v767, 4.5
            %v784 = vmul.f32 %v768, 4.5
            %v785 = vmul.f32 %v769, 4.5
            %v786 = vmul.f32 %v770, 4.5
            %v787 = vmul.f32 %v771, 4.5
            %v788 = vmul.f32 %v772, 4.5
            %v789 = vmul.f32 %v773, 4.5
            %v790 = vmul.f32 %v774, 4.5
            %v791 = vmul.f32 %v775, 4.5
            %v792 = vmul.f32 %v776, 4.5
            %v793 = vmul.f32 %v777, 4.5
            %v794 = vmul.f32 %v778, 4.5
            %v795 = vmul.f32 %v779, 4.5
            %v796 = vmul.f32 %v780, 4.5
            %v797 = vmul.f32 %v781, 4.5
            %v798 = vmul.f32 %v782, 4.5
            %v799 = vmul.f32 %v783, %v767
            %v800 = vmul.f32 %v784, %v768
            %v801 = vmul.f32 %v785, %v769
            %v802 = vmul.f32 %v786, %v770
            %v803 = vmul.f32 %v787, %v771
            %v804 = vmul.f32 %v788, %v772
            %v805 = vmul.f32 %v789, %v773
            %v806 = vmul.f32 %v790, %v774
            %v807 = vmul.f32 %v791, %v775
            %v808 = vmul.f32 %v792, %v776
            %v809 = vmul.f32 %v793, %v777
            %v810 = vmul.f32 %v794, %v778
            %v811 = vmul.f32 %v795, %v779
            %v812 = vmul.f32 %v796, %v780
            %v813 = vmul.f32 %v797, %v781
            %v814 = vmul.f32 %v798, %v782
            %v815 = vsub.f32 %v751, 0.11111111
            %v816 = vsub.f32 %v752, 0.11111111
            %v817 = vsub.f32 %v753, 0.11111111
            %v818 = vsub.f32 %v754, 0.11111111
            %v819 = vsub.f32 %v755, 0.11111111
            %v820 = vsub.f32 %v756, 0.11111111
            %v821 = vsub.f32 %v757, 0.11111111
            %v822 = vsub.f32 %v758, 0.11111111
            %v823 = vsub.f32 %v759, 0.11111111
            %v824 = vsub.f32 %v760, 0.11111111
            %v825 = vsub.f32 %v761, 0.11111111
            %v826 = vsub.f32 %v762, 0.11111111
            %v827 = vsub.f32 %v763, 0.11111111
            %v828 = vsub.f32 %v764, 0.11111111
            %v829 = vsub.f32 %v765, 0.11111111
            %v830 = vsub.f32 %v766, 0.11111111
            %v831 = vmax.f32 %v815, 0.0
            %v832 = vmax.f32 %v816, 0.0
            %v833 = vmax.f32 %v817, 0.0
            %v834 = vmax.f32 %v818, 0.0
            %v835 = vmax.f32 %v819, 0.0
            %v836 = vmax.f32 %v820, 0.0
            %v837 = vmax.f32 %v821, 0.0
            %v838 = vmax.f32 %v822, 0.0
            %v839 = vmax.f32 %v823, 0.0
            %v840 = vmax.f32 %v824, 0.0
            %v841 = vmax.f32 %v825, 0.0
            %v842 = vmax.f32 %v826, 0.0
            %v843 = vmax.f32 %v827, 0.0
            %v844 = vmax.f32 %v828, 0.0
            %v845 = vmax.f32 %v829, 0.0
            %v846 = vmax.f32 %v830, 0.0
            %v847 = vadd.f32 %v799, %v831
            %v848 = vadd.f32 %v800, %v832
            %v849 = vadd.f32 %v801, %v833
            %v850 = vadd.f32 %v802, %v834
            %v851 = vadd.f32 %v803, %v835
            %v852 = vadd.f32 %v804, %v836
            %v853 = vadd.f32 %v805, %v837
            %v854 = vadd.f32 %v806, %v838
            %v855 = vadd.f32 %v807, %v839
            %v856 = vadd.f32 %v808, %v840
            %v857 = vadd.f32 %v809, %v841
            %v858 = vadd.f32 %v810, %v842
            %v859 = vadd.f32 %v811, %v843
            %v860 = vadd.f32 %v812, %v844
            %v861 = vadd.f32 %v813, %v845
            %v862 = vadd.f32 %v814, %v846
            %v863 = vmul.f32 %v847, %v719
            %v864 = vmul.f32 %v848, %v720
            %v865 = vmul.f32 %v849, %v721
            %v866 = vmul.f32 %v850, %v722
            %v867 = vmul.f32 %v851, %v723
            %v868 = vmul.f32 %v852, %v724
            %v869 = vmul.f32 %v853, %v725
            %v870 = vmul.f32 %v854, %v726
            %v871 = vmul.f32 %v855, %v727
            %v872 = vmul.f32 %v856, %v728
            %v873 = vmul.f32 %v857, %v729
            %v874 = vmul.f32 %v858, %v730
            %v875 = vmul.f32 %v859, %v731
            %v876 = vmul.f32 %v860, %v732
            %v877 = vmul.f32 %v861, %v733
            %v878 = vmul.f32 %v862, %v734
            %vm879 = vcmp.gt.f32.partialorder %v719, 0.0
            %vm880 = vcmp.gt.f32.partialorder %v720, 0.0
            %vm881 = vcmp.gt.f32.partialorder %v721, 0.0
            %vm882 = vcmp.gt.f32.partialorder %v722, 0.0
            %vm883 = vcmp.gt.f32.partialorder %v723, 0.0
            %vm884 = vcmp.gt.f32.partialorder %v724, 0.0
            %vm885 = vcmp.gt.f32.partialorder %v725, 0.0
            %vm886 = vcmp.gt.f32.partialorder %v726, 0.0
            %vm887 = vcmp.gt.f32.partialorder %v727, 0.0
            %vm888 = vcmp.gt.f32.partialorder %v728, 0.0
            %vm889 = vcmp.gt.f32.partialorder %v729, 0.0
            %vm890 = vcmp.gt.f32.partialorder %v730, 0.0
            %vm891 = vcmp.gt.f32.partialorder %v731, 0.0
            %vm892 = vcmp.gt.f32.partialorder %v732, 0.0
            %vm893 = vcmp.gt.f32.partialorder %v733, 0.0
            %vm894 = vcmp.gt.f32.partialorder %v734, 0.0
            %v895 = vsel %vm879, 1.0, 0.0
            %v896 = vsel %vm880, 1.0, 0.0
            %v897 = vsel %vm881, 1.0, 0.0
            %v898 = vsel %vm882, 1.0, 0.0
            %v899 = vsel %vm883, 1.0, 0.0
            %v900 = vsel %vm884, 1.0, 0.0
            %v901 = vsel %vm885, 1.0, 0.0
            %v902 = vsel %vm886, 1.0, 0.0
            %v903 = vsel %vm887, 1.0, 0.0
            %v904 = vsel %vm888, 1.0, 0.0
            %v905 = vsel %vm889, 1.0, 0.0
            %v906 = vsel %vm890, 1.0, 0.0
            %v907 = vsel %vm891, 1.0, 0.0
            %v908 = vsel %vm892, 1.0, 0.0
            %v909 = vsel %vm893, 1.0, 0.0
            %v910 = vsel %vm894, 1.0, 0.0
            %v911 = vlaneseq
            %v912 = vshrl.u32 %v911, 7
            %v913 = vadd.s32 %v912, 8
            %v914 = vadd.s32 %v912, 16
            %v915 = vadd.s32 %v912, 24
            %v916 = vadd.s32 %v912, 32
            %v917 = vadd.s32 %v912, 40
            %v918 = vadd.s32 %v912, 48
            %v919 = vadd.s32 %v912, 56
            %v920 = vadd.s32 %v912, 64
            %v921 = vadd.s32 %v912, 72
            %v922 = vadd.s32 %v912, 80
            %v923 = vadd.s32 %v912, 88
            %v924 = vadd.s32 %v912, 96
            %v925 = vadd.s32 %v912, 104
            %v926 = vadd.s32 %v912, 112
            %v927 = vadd.s32 %v912, 120
            %s928 = sadd.s32 %s391, %s683
            %v929 = vstv %s928
            %v930 = vadd.s32 %v929, %v912
            %v931 = vadd.s32 %v929, %v913
            %v932 = vadd.s32 %v929, %v914
            %v933 = vadd.s32 %v929, %v915
            %v934 = vadd.s32 %v929, %v916
            %v935 = vadd.s32 %v929, %v917
            %v936 = vadd.s32 %v929, %v918
            %v937 = vadd.s32 %v929, %v919
            %v938 = vadd.s32 %v929, %v920
            %v939 = vadd.s32 %v929, %v921
            %v940 = vadd.s32 %v929, %v922
            %v941 = vadd.s32 %v929, %v923
            %v942 = vadd.s32 %v929, %v924
            %v943 = vadd.s32 %v929, %v925
            %v944 = vadd.s32 %v929, %v926
            %v945 = vadd.s32 %v929, %v927
            %vm946 = vcmp.lt.s32.totalorder %v930, 3520
            %vm947 = vcmp.lt.s32.totalorder %v931, 3520
            %vm948 = vcmp.lt.s32.totalorder %v932, 3520
            %vm949 = vcmp.lt.s32.totalorder %v933, 3520
            %vm950 = vcmp.lt.s32.totalorder %v934, 3520
            %vm951 = vcmp.lt.s32.totalorder %v935, 3520
            %vm952 = vcmp.lt.s32.totalorder %v936, 3520
            %vm953 = vcmp.lt.s32.totalorder %v937, 3520
            %vm954 = vcmp.lt.s32.totalorder %v938, 3520
            %vm955 = vcmp.lt.s32.totalorder %v939, 3520
            %vm956 = vcmp.lt.s32.totalorder %v940, 3520
            %vm957 = vcmp.lt.s32.totalorder %v941, 3520
            %vm958 = vcmp.lt.s32.totalorder %v942, 3520
            %vm959 = vcmp.lt.s32.totalorder %v943, 3520
            %vm960 = vcmp.lt.s32.totalorder %v944, 3520
            %vm961 = vcmp.lt.s32.totalorder %v945, 3520
            %v962 = vsel %vm946, %v863, 0.0
            %v963 = vsel %vm947, %v864, 0.0
            %v964 = vsel %vm948, %v865, 0.0
            %v965 = vsel %vm949, %v866, 0.0
            %v966 = vsel %vm950, %v867, 0.0
            %v967 = vsel %vm951, %v868, 0.0
            %v968 = vsel %vm952, %v869, 0.0
            %v969 = vsel %vm953, %v870, 0.0
            %v970 = vsel %vm954, %v871, 0.0
            %v971 = vsel %vm955, %v872, 0.0
            %v972 = vsel %vm956, %v873, 0.0
            %v973 = vsel %vm957, %v874, 0.0
            %v974 = vsel %vm958, %v875, 0.0
            %v975 = vsel %vm959, %v876, 0.0
            %v976 = vsel %vm960, %v877, 0.0
            %v977 = vsel %vm961, %v878, 0.0
            %v978 = vsel %vm946, %v895, 0.0
            %v979 = vsel %vm947, %v896, 0.0
            %v980 = vsel %vm948, %v897, 0.0
            %v981 = vsel %vm949, %v898, 0.0
            %v982 = vsel %vm950, %v899, 0.0
            %v983 = vsel %vm951, %v900, 0.0
            %v984 = vsel %vm952, %v901, 0.0
            %v985 = vsel %vm953, %v902, 0.0
            %v986 = vsel %vm954, %v903, 0.0
            %v987 = vsel %vm955, %v904, 0.0
            %v988 = vsel %vm956, %v905, 0.0
            %v989 = vsel %vm957, %v906, 0.0
            %v990 = vsel %vm958, %v907, 0.0
            %v991 = vsel %vm959, %v908, 0.0
            %v992 = vsel %vm960, %v909, 0.0
            %v993 = vsel %vm961, %v910, 0.0
            %v994 = vadd.f32 %v962, %v963
            %v995 = vadd.f32 %v994, %v964
            %v996 = vadd.f32 %v995, %v965
            %v997 = vadd.f32 %v996, %v966
            %v998 = vadd.f32 %v997, %v967
            %v999 = vadd.f32 %v998, %v968
            %v1000 = vadd.f32 %v999, %v969
            %v1001 = vadd.f32 %v1000, %v970
            %v1002 = vadd.f32 %v1001, %v971
            %v1003 = vadd.f32 %v1002, %v972
            %v1004 = vadd.f32 %v1003, %v973
            %v1005 = vadd.f32 %v1004, %v974
            %v1006 = vadd.f32 %v1005, %v975
            %v1007 = vadd.f32 %v1006, %v976
            %v1008 = vadd.f32 %v1007, %v977
            %v1009 = vadd.f32 %v681, %v1008
            %v1010 = vadd.f32 %v978, %v979
            %v1011 = vadd.f32 %v1010, %v980
            %v1012 = vadd.f32 %v1011, %v981
            %v1013 = vadd.f32 %v1012, %v982
            %v1014 = vadd.f32 %v1013, %v983
            %v1015 = vadd.f32 %v1014, %v984
            %v1016 = vadd.f32 %v1015, %v985
            %v1017 = vadd.f32 %v1016, %v986
            %v1018 = vadd.f32 %v1017, %v987
            %v1019 = vadd.f32 %v1018, %v988
            %v1020 = vadd.f32 %v1019, %v989
            %v1021 = vadd.f32 %v1020, %v990
            %v1022 = vadd.f32 %v1021, %v991
            %v1023 = vadd.f32 %v1022, %v992
            %v1024 = vadd.f32 %v1023, %v993
            %v1025 = vadd.f32 %v682, %v1024
          $region68: #{tpu_custom_call.1} parent=62 // loop_footer
            %s680 = sadd.s32 1, %s676
          $region69: #{tpu_custom_call.1} parent=62 // loop_footer_branch
            %675 = sbr.rel target = $region65
          $region70: #{tpu_custom_call.1} parent=62 // loop_exit
            _
          %v1026 = vld [vmem:[#allocation8] sm:$0xff]
          %v1027 = vadd.f32 %v1026, %v681
          %1028 = vst [vmem:[#allocation8] sm:$0xff] %v1027
          %v1029 = vld [vmem:[#allocation9] sm:$0xff]
          %v1030 = vadd.f32 %v1029, %v682
          %1031 = vst [vmem:[#allocation9] sm:$0xff] %v1030
        $region63: #{tpu_custom_call.1} parent=31 // pred_fallthru
          _
        // Predicated region
        $region71: #{tpu_custom_call.1} parent=31 // pred_check
          %p1032 = pneg %p156
        $region72: #{tpu_custom_call.1} parent=31 // pred_check_branch
          %1034 = sbr.rel (%p1032) target = $region74
        $region73: #{tpu_custom_call.1} parent=31 // pred_region
          %s1036 = ssub.s32 128, 128
          %1037 = vsyncadd [#allocation4], %s1036
          %s1038 = smul.addr %s28, 128
          %s1039 = scalar_lea.hbm %s3, %s1038
          %s1041 = sshll.u32 [#allocation8], 4
          %s1042 = int_to_ptr.vmem [resolvable:$true] %s1041
          %1044 = dma.vmem_to_hbm [thread:$0]  %s1042, 128, %s1039, [#allocation4]
        $region74: #{tpu_custom_call.1} parent=31 // pred_fallthru
          _
        // Predicated region
        $region75: #{tpu_custom_call.1} parent=31 // pred_check
          %p1045 = pneg %p182
        $region76: #{tpu_custom_call.1} parent=31 // pred_check_branch
          %1047 = sbr.rel (%p1045) target = $region78
        $region77: #{tpu_custom_call.1} parent=31 // pred_region
          %s1049 = ssub.s32 128, 128
          %1050 = vsyncadd [#allocation10], %s1049
          %s1051 = smul.addr %s28, 128
          %s1052 = scalar_lea.hbm %s4, %s1051
          %s1054 = sshll.u32 [#allocation9], 4
          %s1055 = int_to_ptr.vmem [resolvable:$true] %s1054
          %1057 = dma.vmem_to_hbm [thread:$0]  %s1055, 128, %s1052, [#allocation10]
        $region78: #{tpu_custom_call.1} parent=31 // pred_fallthru
          _
        // Predicated region
        $region79: #{tpu_custom_call.1} parent=31 // pred_check
          %p1058 = pneg %p156
        $region80: #{tpu_custom_call.1} parent=31 // pred_check_branch
          %1060 = sbr.rel (%p1058) target = $region82
        $region81: #{tpu_custom_call.1} parent=31 // pred_region
          %1061 = dma.done [#allocation4], 128
        $region82: #{tpu_custom_call.1} parent=31 // pred_fallthru
          _
        // Predicated region
        $region83: #{tpu_custom_call.1} parent=31 // pred_check
          %p1062 = pneg %p182
        $region84: #{tpu_custom_call.1} parent=31 // pred_check_branch
          %1064 = sbr.rel (%p1062) target = $region86
        $region85: #{tpu_custom_call.1} parent=31 // pred_region
          %1065 = dma.done [#allocation10], 128
        $region86: #{tpu_custom_call.1} parent=31 // pred_fallthru
          _
      $region32: #{tpu_custom_call.1} parent=5 // pred_fallthru
        _
      %p1066 = scmp.le.s32.totalorder 2, %s19
      // Predicated region
      $region87: #{tpu_custom_call.1} parent=5 // pred_check
        %p1067 = pneg %p1066
      $region88: #{tpu_custom_call.1} parent=5 // pred_check_branch
        %1069 = sbr.rel (%p1067) target = $region90
      $region89: #{tpu_custom_call.1} parent=5 // pred_region
        %s1070 = ssub.s32 %s19, 2
      $region90: #{tpu_custom_call.1} parent=5 // pred_fallthru
        _
    $region6: #{tpu_custom_call.1} parent=1 // loop_footer
      %s23 = sadd.s32 1, %s19
    $region7: #{tpu_custom_call.1} parent=1 // loop_footer_branch
      %18 = sbr.rel target = $region3
    $region8: #{tpu_custom_call.1} parent=1 // loop_exit
      _
    %1071 = vsyncpa [#allocation3], 1
    %s1072 = scalar_lea.sflag [#allocation3], 1
    %1073 = vsyncpa %s1072, 1
    %1074 = vsyncpa [#allocation6], 1
    %s1075 = scalar_lea.sflag [#allocation6], 1
    %1076 = vsyncpa %s1075, 1
    %1077 = vsyncpa [#allocation4], 1
    %s1078 = scalar_lea.sflag [#allocation4], 1
    %1079 = vsyncpa %s1078, 1
    %1080 = vsyncpa [#allocation10], 1

</llo_original>
